<compile_context>
chip_gen: v6e
topology: v6e:2x2x1
jax: 0.10.0
libtpu: 0.0.40
codegen_flags: <defaults>
</compile_context>

<pallas_src>
import functools

import jax
import jax.numpy as jnp
from jax.experimental import pallas as pl
from jax.experimental.pallas import tpu as pltpu

EPS = 1e-5


def _round_up(x: int, m: int) -> int:
    return ((x + m - 1) // m) * m


# --------------------------------------------------------------------------
# Kernel: 4 MXU matmuls + 3 ReLUs (BatchNorms already folded into weights).
# Everything float32; f32 accumulation via preferred_element_type.
# --------------------------------------------------------------------------
def _varmax_kernel(
    x_ref,                      # (TM, F)        f32
    w1_ref, b1_ref,             # (F,   H2p) / (1, H2p)
    w2_ref, b2_ref,             # (H2p, Hp)  / (1, Hp)
    w3_ref, b3_ref,             # (Hp,  HHp) / (1, HHp)
    w4_ref, b4_ref,             # (HHp, NCp) / (1, NCp)
    o_ref,                      # (TM, num_classes) f32
    *, num_classes: int,
):
    x = x_ref[...]

    h = jnp.dot(x, w1_ref[...], preferred_element_type=jnp.float32) + b1_ref[...]
    h = jnp.maximum(h, 0.0)

    h = jnp.dot(h, w2_ref[...], preferred_element_type=jnp.float32) + b2_ref[...]
    h = jnp.maximum(h, 0.0)

    h = jnp.dot(h, w3_ref[...], preferred_element_type=jnp.float32) + b3_ref[...]
    h = jnp.maximum(h, 0.0)

    logits = jnp.dot(h, w4_ref[...], preferred_element_type=jnp.float32) + b4_ref[...]
    # Write only the real logit columns (narrow masked store; compute slack is
    # huge, HBM writeback is the scarce resource).
    o_ref[...] = logits[:, :num_classes].astype(o_ref.dtype)


# --------------------------------------------------------------------------
# Parameter construction: PyTorch-equivalent init, BN folded, lane-padded.
# --------------------------------------------------------------------------
def _kaiming_normal_fan_out(key, out_dim, in_dim):
    # nn.init.kaiming_normal_(w, mode='fan_out', nonlinearity='relu')
    # torch Linear weight is (out, in); fan_out = out_dim; std = sqrt(2/fan_out)
    std = (2.0 / out_dim) ** 0.5
    return std * jax.random.normal(key, (out_dim, in_dim), dtype=jnp.float32)


def _bn_fold_vectors(dim):
    # Eval-mode BN at PyTorch init: gamma=1, beta=0, mean=0, var=1.
    gamma = jnp.ones((dim,), jnp.float32)
    beta = jnp.zeros((dim,), jnp.float32)
    running_mean = jnp.zeros((dim,), jnp.float32)
    running_var = jnp.ones((dim,), jnp.float32)
    scale = gamma / jnp.sqrt(running_var + EPS)
    shift = beta - running_mean * scale
    return scale, shift


def _fold_bn_into_linear(scale, shift, w_in_out, bias):
    # y = BN(x) @ W + b = x @ (diag(s) @ W) + (t @ W + b)
    w_f = scale[:, None] * w_in_out
    b_f = shift @ w_in_out + bias
    return w_f, b_f


def _pad2(w, rows, cols):
    return jnp.pad(w, ((0, rows - w.shape[0]), (0, cols - w.shape[1])))


def init_varmax_params(key, input_size, hidden_size=64, num_classes=2):
    k1, k2, k3, k4 = jax.random.split(key, 4)

    h2 = hidden_size * 2
    hid = hidden_size
    hh = hidden_size // 2
    nc = num_classes

    # Lane-padded (multiple-of-128) widths for the hidden / matmul dims.
    h2p = _round_up(h2, 128)
    hidp = _round_up(hid, 128)
    hhp = _round_up(hh, 128)
    ncp = _round_up(nc, 128)

    # Raw (in, out) weights, zero biases (PyTorch init).
    w1 = _kaiming_normal_fan_out(k1, h2, input_size).T        # (F,   h2)
    w2 = _kaiming_normal_fan_out(k2, hid, h2).T               # (h2,  hid)
    w3 = _kaiming_normal_fan_out(k3, hh, hid).T               # (hid, hh)
    w4 = _kaiming_normal_fan_out(k4, nc, hh).T                # (hh,  nc)
    b1 = jnp.zeros((h2,), jnp.float32)
    b2 = jnp.zeros((hid,), jnp.float32)
    b3 = jnp.zeros((hh,), jnp.float32)
    b4 = jnp.zeros((nc,), jnp.float32)

    # Fold each BatchNorm into the Linear that consumes its output.
    s0, t0 = _bn_fold_vectors(input_size)   # BN0 -> Linear1
    s1, t1 = _bn_fold_vectors(h2)           # BN1 -> Linear2
    s2, t2 = _bn_fold_vectors(hid)          # BN2 -> Linear3
    s3, t3 = _bn_fold_vectors(hh)           # BN3 -> Linear4
    w1, b1 = _fold_bn_into_linear(s0, t0, w1, b1)
    w2, b2 = _fold_bn_into_linear(s1, t1, w2, b2)
    w3, b3 = _fold_bn_into_linear(s2, t2, w3, b3)
    w4, b4 = _fold_bn_into_linear(s3, t3, w4, b4)

    # Zero-pad hidden lane dims to multiples of 128.  Padded output columns
    # have zero weight and zero bias, so ReLU keeps them exactly 0 and padded
    # input rows of the next layer contribute nothing.
    w1 = _pad2(w1, input_size, h2p)
    w2 = _pad2(w2, h2p, hidp)
    w3 = _pad2(w3, hidp, hhp)
    w4 = _pad2(w4, hhp, ncp)
    b1 = jnp.pad(b1, (0, h2p - h2)).reshape(1, h2p)
    b2 = jnp.pad(b2, (0, hidp - hid)).reshape(1, hidp)
    b3 = jnp.pad(b3, (0, hhp - hh)).reshape(1, hhp)
    b4 = jnp.pad(b4, (0, ncp - nc)).reshape(1, ncp)

    # All-f32 params (weights are tiny and VMEM-resident; f32 keeps the kernel
    # bit-faithful to the eval-mode PyTorch forward).
    return {"w1": w1, "b1": b1, "w2": w2, "b2": b2,
            "w3": w3, "b3": b3, "w4": w4, "b4": b4}


# --------------------------------------------------------------------------
# Wrapper: batch-tiled pallas_call (no wrapper-side pad / cast / slice).
# --------------------------------------------------------------------------
def _pick_tile(B: int, F: int) -> int:
    # Large tiles amortize the ~0.35us/step pipeline overhead; keep the
    # double-buffered f32 x tile under ~4 MiB for small-VMEM parts.
    vmem_rows = max(8, (4 * 1024 * 1024) // (4 * max(F, 1)))
    tm = min(2048, vmem_rows, _round_up(B, 8))
    if B >= 1024:
        # Ensure >=2 grid steps so the ("parallel",) axis feeds both v7x TCs.
        tm = min(tm, _round_up((B + 1) // 2, 8))
    return max(8, (tm // 8) * 8)


@functools.partial(jax.jit, static_argnames=("num_classes",))
def varmax_forward(x, params, num_classes=2):
    B, F = x.shape
    w1, b1 = params["w1"], params["b1"]
    w2, b2 = params["w2"], params["b2"]
    w3, b3 = params["w3"], params["b3"]
    w4, b4 = params["w4"], params["b4"]
    h2p, hidp, hhp, ncp = w1.shape[1], w2.shape[1], w3.shape[1], w4.shape[1]

    TM = _pick_tile(B, F)
    grid = (pl.cdiv(B, TM),)          # ragged last tile handled by masking

    def tile_map(i):
        return (i, 0)

    def const_map(i):
        return (0, 0)

    flops = 2 * B * (F * h2p + h2p * hidp + hidp * hhp + hhp * ncp)
    bytes_accessed = (
        B * F * 4                                            # x (f32)
        + (w1.size + w2.size + w3.size + w4.size) * 4        # weights (f32)
        + (b1.size + b2.size + b3.size + b4.size) * 4        # biases (f32)
        + B * num_classes * 4                                # narrow output
    )

    kernel = functools.partial(_varmax_kernel, num_classes=num_classes)

    out = pl.pallas_call(
        kernel,
        out_shape=jax.ShapeDtypeStruct((B, num_classes), jnp.float32),
        grid=grid,
        in_specs=[
            pl.BlockSpec((TM, F), tile_map),            # x, pipelined per tile
            pl.BlockSpec((F, h2p), const_map),          # weights/biases stay
            pl.BlockSpec((1, h2p), const_map),          # VMEM-resident
            pl.BlockSpec((h2p, hidp), const_map),
            pl.BlockSpec((1, hidp), const_map),
            pl.BlockSpec((hidp, hhp), const_map),
            pl.BlockSpec((1, hhp), const_map),
            pl.BlockSpec((hhp, ncp), const_map),
            pl.BlockSpec((1, ncp), const_map),
        ],
        out_specs=pl.BlockSpec((TM, num_classes), tile_map),  # narrow out block
        compiler_params=pltpu.CompilerParams(
            dimension_semantics=("parallel",),          # 2 TCs on v7x
            vmem_limit_bytes=32 * 1024 * 1024,          # headroom on v5e
        ),
        cost_estimate=pl.CostEstimate(
            flops=flops, transcendentals=0, bytes_accessed=bytes_accessed
        ),
    )(x, w1, b1, w2, b2, w3, b3, w4, b4)

    return out


# --------------------------------------------------------------------------
# Pure-JAX reference of the same eval-mode forward (f32, highest precision).
# --------------------------------------------------------------------------
def varmax_reference(x, params, num_classes=2):
    hp = jax.lax.Precision.HIGHEST
    h = jnp.maximum(jnp.dot(x, params["w1"], precision=hp) + params["b1"], 0.0)
    h = jnp.maximum(jnp.dot(h, params["w2"], precision=hp) + params["b2"], 0.0)
    h = jnp.maximum(jnp.dot(h, params["w3"], precision=hp) + params["b3"], 0.0)
    logits = jnp.dot(h, params["w4"], precision=hp) + params["b4"]
    return logits[:, :num_classes]


if __name__ == "__main__":
    key = jax.random.PRNGKey(0)
    k_x, k_x2, k_p = jax.random.split(key, 3)

    batch = 8
    input_size = 32
    hidden_size = 64
    num_classes = 2

    params = init_varmax_params(k_p, input_size, hidden_size, num_classes)

    # Small primary check.
    x = jax.random.normal(k_x, (batch, input_size), dtype=jnp.float32)
    out = jax.block_until_ready(varmax_forward(x, params, num_classes=num_classes))
    ref = varmax_reference(x, params, num_classes=num_classes)
    assert out.shape == (batch, num_classes)
    assert jnp.allclose(out, ref, atol=2e-2, rtol=2e-2), "mismatch vs reference"

    # Ragged-batch check (exercises the masked partial tile path).
    x2 = jax.random.normal(k_x2, (100, input_size), dtype=jnp.float32)
    out2 = jax.block_until_ready(varmax_forward(x2, params, num_classes=num_classes))
    ref2 = varmax_reference(x2, params, num_classes=num_classes)
    assert out2.shape == (100, num_classes)
    assert jnp.allclose(out2, ref2, atol=2e-2, rtol=2e-2), "mismatch vs reference (ragged)"

    print("KERNEL_OK")
</pallas_src>

<mosaic_0001>
module attributes {stable_mosaic.version = 11 : i64} {
  func.func @_varmax_kernel(%arg0: i32, %arg1: memref<8x32xf32, #tpu.memory_space<vmem>>, %arg2: memref<32x128xf32, #tpu.memory_space<vmem>>, %arg3: memref<1x128xf32, #tpu.memory_space<vmem>>, %arg4: memref<128x128xf32, #tpu.memory_space<vmem>>, %arg5: memref<1x128xf32, #tpu.memory_space<vmem>>, %arg6: memref<128x128xf32, #tpu.memory_space<vmem>>, %arg7: memref<1x128xf32, #tpu.memory_space<vmem>>, %arg8: memref<128x128xf32, #tpu.memory_space<vmem>>, %arg9: memref<1x128xf32, #tpu.memory_space<vmem>>, %arg10: memref<8x2xf32, #tpu.memory_space<vmem>>) attributes {dimension_semantics = [#tpu.dimension_semantics<parallel>], iteration_bounds = array<i64: 1>, scalar_prefetch = 0 : i64, scratch_operands = 0 : i64, tpu.core_type = #tpu.core_type<tc>, window_params = [{transform_indices = @transform_0, window_bounds = array<i64: 8, 32>}, {pipeline_mode = #tpu.pipeline_mode<synchronous>, transform_indices = @transform_1, window_bounds = array<i64: 32, 128>}, {pipeline_mode = #tpu.pipeline_mode<synchronous>, transform_indices = @transform_2, window_bounds = array<i64: 1, 128>}, {pipeline_mode = #tpu.pipeline_mode<synchronous>, transform_indices = @transform_3, window_bounds = array<i64: 128, 128>}, {pipeline_mode = #tpu.pipeline_mode<synchronous>, transform_indices = @transform_4, window_bounds = array<i64: 1, 128>}, {pipeline_mode = #tpu.pipeline_mode<synchronous>, transform_indices = @transform_5, window_bounds = array<i64: 128, 128>}, {pipeline_mode = #tpu.pipeline_mode<synchronous>, transform_indices = @transform_6, window_bounds = array<i64: 1, 128>}, {pipeline_mode = #tpu.pipeline_mode<synchronous>, transform_indices = @transform_7, window_bounds = array<i64: 128, 128>}, {pipeline_mode = #tpu.pipeline_mode<synchronous>, transform_indices = @transform_8, window_bounds = array<i64: 1, 128>}, {transform_indices = @transform_9, window_bounds = array<i64: 8, 2>}]} {
    %c0 = arith.constant 0 : index
    %c0_0 = arith.constant 0 : index
    %0 = vector.load %arg1[%c0, %c0_0] : memref<8x32xf32, #tpu.memory_space<vmem>>, vector<8x32xf32>
    %c0_1 = arith.constant 0 : index
    %c0_2 = arith.constant 0 : index
    %1 = vector.load %arg2[%c0_1, %c0_2] : memref<32x128xf32, #tpu.memory_space<vmem>>, vector<32x128xf32>
    %cst = arith.constant dense<0.000000e+00> : vector<8x128xf32>
    %2 = tpu.matmul %0, %1, %cst {dimension_numbers = #tpu.dot_dimension_numbers<[1], [0], [0], [1], [0, 0, 1, 1], [], []>} : vector<8x32xf32>, vector<32x128xf32>, vector<8x128xf32> -> vector<8x128xf32>
    %c0_3 = arith.constant 0 : index
    %c0_4 = arith.constant 0 : index
    %3 = vector.load %arg3[%c0_3, %c0_4] : memref<1x128xf32, #tpu.memory_space<vmem>>, vector<1x128xf32>
    %4 = vector.broadcast %3 : vector<1x128xf32> to vector<8x128xf32>
    %5 = arith.addf %2, %4 : vector<8x128xf32>
    %cst_5 = arith.constant 0.000000e+00 : f32
    %6 = vector.broadcast %cst_5 : f32 to vector<8x128xf32>
    %7 = arith.maximumf %5, %6 : vector<8x128xf32>
    %c0_6 = arith.constant 0 : index
    %c0_7 = arith.constant 0 : index
    %8 = vector.load %arg4[%c0_6, %c0_7] : memref<128x128xf32, #tpu.memory_space<vmem>>, vector<128x128xf32>
    %cst_8 = arith.constant dense<0.000000e+00> : vector<8x128xf32>
    %9 = tpu.matmul %7, %8, %cst_8 {dimension_numbers = #tpu.dot_dimension_numbers<[1], [0], [0], [1], [0, 0, 1, 1], [], []>} : vector<8x128xf32>, vector<128x128xf32>, vector<8x128xf32> -> vector<8x128xf32>
    %c0_9 = arith.constant 0 : index
    %c0_10 = arith.constant 0 : index
    %10 = vector.load %arg5[%c0_9, %c0_10] : memref<1x128xf32, #tpu.memory_space<vmem>>, vector<1x128xf32>
    %11 = vector.broadcast %10 : vector<1x128xf32> to vector<8x128xf32>
    %12 = arith.addf %9, %11 : vector<8x128xf32>
    %cst_11 = arith.constant 0.000000e+00 : f32
    %13 = vector.broadcast %cst_11 : f32 to vector<8x128xf32>
    %14 = arith.maximumf %12, %13 : vector<8x128xf32>
    %c0_12 = arith.constant 0 : index
    %c0_13 = arith.constant 0 : index
    %15 = vector.load %arg6[%c0_12, %c0_13] : memref<128x128xf32, #tpu.memory_space<vmem>>, vector<128x128xf32>
    %cst_14 = arith.constant dense<0.000000e+00> : vector<8x128xf32>
    %16 = tpu.matmul %14, %15, %cst_14 {dimension_numbers = #tpu.dot_dimension_numbers<[1], [0], [0], [1], [0, 0, 1, 1], [], []>} : vector<8x128xf32>, vector<128x128xf32>, vector<8x128xf32> -> vector<8x128xf32>
    %c0_15 = arith.constant 0 : index
    %c0_16 = arith.constant 0 : index
    %17 = vector.load %arg7[%c0_15, %c0_16] : memref<1x128xf32, #tpu.memory_space<vmem>>, vector<1x128xf32>
    %18 = vector.broadcast %17 : vector<1x128xf32> to vector<8x128xf32>
    %19 = arith.addf %16, %18 : vector<8x128xf32>
    %cst_17 = arith.constant 0.000000e+00 : f32
    %20 = vector.broadcast %cst_17 : f32 to vector<8x128xf32>
    %21 = arith.maximumf %19, %20 : vector<8x128xf32>
    %c0_18 = arith.constant 0 : index
    %c0_19 = arith.constant 0 : index
    %22 = vector.load %arg8[%c0_18, %c0_19] : memref<128x128xf32, #tpu.memory_space<vmem>>, vector<128x128xf32>
    %cst_20 = arith.constant dense<0.000000e+00> : vector<8x128xf32>
    %23 = tpu.matmul %21, %22, %cst_20 {dimension_numbers = #tpu.dot_dimension_numbers<[1], [0], [0], [1], [0, 0, 1, 1], [], []>} : vector<8x128xf32>, vector<128x128xf32>, vector<8x128xf32> -> vector<8x128xf32>
    %c0_21 = arith.constant 0 : index
    %c0_22 = arith.constant 0 : index
    %24 = vector.load %arg9[%c0_21, %c0_22] : memref<1x128xf32, #tpu.memory_space<vmem>>, vector<1x128xf32>
    %25 = vector.broadcast %24 : vector<1x128xf32> to vector<8x128xf32>
    %26 = arith.addf %23, %25 : vector<8x128xf32>
    %27 = vector.extract_strided_slice %26 {offsets = [0, 0], sizes = [8, 2], strides = [1, 1]} : vector<8x128xf32> to vector<8x2xf32>
    %c0_23 = arith.constant 0 : index
    %c0_24 = arith.constant 0 : index
    %28 = vector.load %arg10[%c0_23, %c0_24] : memref<8x2xf32, #tpu.memory_space<vmem>>, vector<8x2xf32>
    tpu.vector_store %arg10[%c0_23, %c0_24], %27 {strides = array<i32>} : memref<8x2xf32, #tpu.memory_space<vmem>>, vector<8x2xf32>,
    return
  }
  func.func @transform_0(%arg0: i32) -> (i32, i32) {
    %c0_i32 = arith.constant 0 : i32
    %c0_i32_0 = arith.constant 0 : i32
    return %arg0, %c0_i32 : i32, i32
  }
  func.func @transform_1(%arg0: i32) -> (i32, i32) {
    %c0_i32 = arith.constant 0 : i32
    %c0_i32_0 = arith.constant 0 : i32
    %c0_i32_1 = arith.constant 0 : i32
    return %c0_i32, %c0_i32_0 : i32, i32
  }
  func.func @transform_2(%arg0: i32) -> (i32, i32) {
    %c0_i32 = arith.constant 0 : i32
    %c0_i32_0 = arith.constant 0 : i32
    %c0_i32_1 = arith.constant 0 : i32
    return %c0_i32, %c0_i32_0 : i32, i32
  }
  func.func @transform_3(%arg0: i32) -> (i32, i32) {
    %c0_i32 = arith.constant 0 : i32
    %c0_i32_0 = arith.constant 0 : i32
    %c0_i32_1 = arith.constant 0 : i32
    return %c0_i32, %c0_i32_0 : i32, i32
  }
  func.func @transform_4(%arg0: i32) -> (i32, i32) {
    %c0_i32 = arith.constant 0 : i32
    %c0_i32_0 = arith.constant 0 : i32
    %c0_i32_1 = arith.constant 0 : i32
    return %c0_i32, %c0_i32_0 : i32, i32
  }
  func.func @transform_5(%arg0: i32) -> (i32, i32) {
    %c0_i32 = arith.constant 0 : i32
    %c0_i32_0 = arith.constant 0 : i32
    %c0_i32_1 = arith.constant 0 : i32
    return %c0_i32, %c0_i32_0 : i32, i32
  }
  func.func @transform_6(%arg0: i32) -> (i32, i32) {
    %c0_i32 = arith.constant 0 : i32
    %c0_i32_0 = arith.constant 0 : i32
    %c0_i32_1 = arith.constant 0 : i32
    return %c0_i32, %c0_i32_0 : i32, i32
  }
  func.func @transform_7(%arg0: i32) -> (i32, i32) {
    %c0_i32 = arith.constant 0 : i32
    %c0_i32_0 = arith.constant 0 : i32
    %c0_i32_1 = arith.constant 0 : i32
    return %c0_i32, %c0_i32_0 : i32, i32
  }
  func.func @transform_8(%arg0: i32) -> (i32, i32) {
    %c0_i32 = arith.constant 0 : i32
    %c0_i32_0 = arith.constant 0 : i32
    %c0_i32_1 = arith.constant 0 : i32
    return %c0_i32, %c0_i32_0 : i32, i32
  }
  func.func @transform_9(%arg0: i32) -> (i32, i32) {
    %c0_i32 = arith.constant 0 : i32
    %c0_i32_0 = arith.constant 0 : i32
    return %arg0, %c0_i32 : i32, i32
  }
}

</mosaic_0001>

<llo_original>
// kernel: varmax_forward.1
$region0: #{varmax_forward.1}
  #allocation0 [shape = 'u32[]', space=smem, size = 0x4, offset = 0x4, fixed_abs, tag = 'smem constant byte address 0x4 - core index']
  #allocation1 [shape = 'u32[144,128]{1,0:T(1,128)}', space=vmem, size = 0x12000, scoped, tag = 'internal scratch']
  %s0 = inlined_call_operand.hbm [shape: f32[8,32], index: 0, kind: input, shape index: {}]
  %s1 = inlined_call_operand.hbm [shape: f32[32,128], index: 1, kind: input, shape index: {}]
  %s2 = inlined_call_operand.vmem [shape: f32[1,128], index: 2, kind: input, shape index: {}]
  %s3 = inlined_call_operand.hbm [shape: f32[128,128], index: 3, kind: input, shape index: {}]
  %s4 = inlined_call_operand.vmem [shape: f32[1,128], index: 4, kind: input, shape index: {}]
  %s5 = inlined_call_operand.hbm [shape: f32[128,128], index: 5, kind: input, shape index: {}]
  %s6 = inlined_call_operand.vmem [shape: f32[1,128], index: 6, kind: input, shape index: {}]
  %s7 = inlined_call_operand.hbm [shape: f32[128,128], index: 7, kind: input, shape index: {}]
  %s8 = inlined_call_operand.vmem [shape: f32[1,128], index: 8, kind: input, shape index: {}]
  %s9 = inlined_call_operand.vmem [shape: f32[8,2], index: 9, kind: output, shape index: {}]
  %s10 = sld [smem:[#allocation0]]
  $region66: #{varmax_forward.1} parent=0
    _
  %s12 = ssub.s32 1, %s10
  %s13 = scalar_select 0, %s12, %s10
  $region1: #{varmax_forward.1} parent=0
    #allocation2 [shape = 'u8[4096]{0}', space=vmem, size = 0x1000, scoped, tag = 'input window, operand 0, single buffered']
    #allocation3 [shape = 's32[1]{0}', space=sflag, size = 0x4, scoped, tag = 'scoped memory for varmax_forward.1']
    #allocation4 [shape = 'u8[16384]{0}', space=vmem, size = 0x4000, scoped, tag = 'input window, operand 1, single buffered']
    #allocation5 [shape = 's32[1]{0}', space=sflag, size = 0x4, scoped, tag = 'scoped memory for varmax_forward.1']
    #allocation6 [shape = 'u8[65536]{0}', space=vmem, size = 0x10000, scoped, tag = 'input window, operand 3, single buffered']
    #allocation7 [shape = 'u8[65536]{0}', space=vmem, size = 0x10000, scoped, tag = 'input window, operand 5, single buffered']
    #allocation8 [shape = 's32[1]{0}', space=sflag, size = 0x4, scoped, tag = 'scoped memory for varmax_forward.1']
    #allocation9 [shape = 'u8[65536]{0}', space=vmem, size = 0x10000, scoped, tag = 'input window, operand 7, single buffered']
    %14 = vsyncpa [#allocation3], 0
    %15 = vsyncpa [#allocation5], 0
    %16 = vsyncpa [#allocation8], 0
    // Predicated region
    $region2: #{varmax_forward.1} parent=1 // pred_check
      _
    $region3: #{varmax_forward.1} parent=1 // pred_check_branch
      %18 = sbr.rel (0) target = $region5
    $region4: #{varmax_forward.1} parent=1 // pred_region
      %s20 = ssub.s32 128, 128
      %21 = vsyncadd [#allocation3], %s20
      %s23 = sshll.u32 [#allocation2], 4
      %s24 = int_to_ptr.vmem [resolvable:$true] %s23
      %26 = dma.hbm_to_vmem [thread:$0]  %s0, 128, %s24, [#allocation3]
    $region5: #{varmax_forward.1} parent=1 // pred_fallthru
      _
    // Predicated region
    $region6: #{varmax_forward.1} parent=1 // pred_check
      _
    $region7: #{varmax_forward.1} parent=1 // pred_check_branch
      %28 = sbr.rel (0) target = $region9
    $region8: #{varmax_forward.1} parent=1 // pred_region
      %s30 = ssub.s32 512, 512
      %31 = vsyncadd [#allocation5], %s30
      %s32 = sshll.u32 [#allocation4], 4
      %s33 = int_to_ptr.vmem [resolvable:$true] %s32
      %38 = dma.hbm_to_vmem [thread:$0]  %s1, 512, %s33, [#allocation5], 128, 128, 8
    $region9: #{varmax_forward.1} parent=1 // pred_fallthru
      _
    // Predicated region
    $region10: #{varmax_forward.1} parent=1 // pred_check
      _
    $region11: #{varmax_forward.1} parent=1 // pred_check_branch
      %40 = sbr.rel (0) target = $region13
    $region12: #{varmax_forward.1} parent=1 // pred_region
      _
    $region13: #{varmax_forward.1} parent=1 // pred_fallthru
      _
    // Predicated region
    $region14: #{varmax_forward.1} parent=1 // pred_check
      _
    $region15: #{varmax_forward.1} parent=1 // pred_check_branch
      %42 = sbr.rel (0) target = $region17
    $region16: #{varmax_forward.1} parent=1 // pred_region
      %s44 = ssub.s32 2048, 2048
      %45 = vsyncadd [#allocation5], %s44
      %s46 = sshll.u32 [#allocation6], 4
      %s47 = int_to_ptr.vmem [resolvable:$true] %s46
      %52 = dma.hbm_to_vmem [thread:$0]  %s3, 2048, %s47, [#allocation5], 128, 128, 8
    $region17: #{varmax_forward.1} parent=1 // pred_fallthru
      _
    // Predicated region
    $region18: #{varmax_forward.1} parent=1 // pred_check
      _
    $region19: #{varmax_forward.1} parent=1 // pred_check_branch
      %54 = sbr.rel (0) target = $region21
    $region20: #{varmax_forward.1} parent=1 // pred_region
      _
    $region21: #{varmax_forward.1} parent=1 // pred_fallthru
      _
    // Predicated region
    $region22: #{varmax_forward.1} parent=1 // pred_check
      _
    $region23: #{varmax_forward.1} parent=1 // pred_check_branch
      %56 = sbr.rel (0) target = $region25
    $region24: #{varmax_forward.1} parent=1 // pred_region
      %s58 = ssub.s32 2048, 2048
      %59 = vsyncadd [#allocation8], %s58
      %s60 = sshll.u32 [#allocation7], 4
      %s61 = int_to_ptr.vmem [resolvable:$true] %s60
      %66 = dma.hbm_to_vmem [thread:$0]  %s5, 2048, %s61, [#allocation8], 128, 128, 8
    $region25: #{varmax_forward.1} parent=1 // pred_fallthru
      _
    // Predicated region
    $region26: #{varmax_forward.1} parent=1 // pred_check
      _
    $region27: #{varmax_forward.1} parent=1 // pred_check_branch
      %68 = sbr.rel (0) target = $region29
    $region28: #{varmax_forward.1} parent=1 // pred_region
      _
    $region29: #{varmax_forward.1} parent=1 // pred_fallthru
      _
    // Predicated region
    $region30: #{varmax_forward.1} parent=1 // pred_check
      _
    $region31: #{varmax_forward.1} parent=1 // pred_check_branch
      %70 = sbr.rel (0) target = $region33
    $region32: #{varmax_forward.1} parent=1 // pred_region
      %s72 = ssub.s32 2048, 2048
      %73 = vsyncadd [#allocation8], %s72
      %s74 = sshll.u32 [#allocation9], 4
      %s75 = int_to_ptr.vmem [resolvable:$true] %s74
      %80 = dma.hbm_to_vmem [thread:$0]  %s7, 2048, %s75, [#allocation8], 128, 128, 8
    $region33: #{varmax_forward.1} parent=1 // pred_fallthru
      _
    // Predicated region
    $region34: #{varmax_forward.1} parent=1 // pred_check
      _
    $region35: #{varmax_forward.1} parent=1 // pred_check_branch
      %82 = sbr.rel (0) target = $region37
    $region36: #{varmax_forward.1} parent=1 // pred_region
      _
    $region37: #{varmax_forward.1} parent=1 // pred_fallthru
      _
    // Predicated region
    $region38: #{varmax_forward.1} parent=1 // pred_check
      _
    $region39: #{varmax_forward.1} parent=1 // pred_check_branch
      %84 = sbr.rel (0) target = $region41
    $region40: #{varmax_forward.1} parent=1 // pred_region
      %85 = dma.done [#allocation3], 128
    $region41: #{varmax_forward.1} parent=1 // pred_fallthru
      _
    // Predicated region
    $region42: #{varmax_forward.1} parent=1 // pred_check
      _
    $region43: #{varmax_forward.1} parent=1 // pred_check_branch
      %87 = sbr.rel (0) target = $region45
    $region44: #{varmax_forward.1} parent=1 // pred_region
      %88 = dma.done [#allocation5], 512
    $region45: #{varmax_forward.1} parent=1 // pred_fallthru
      _
    // Predicated region
    $region46: #{varmax_forward.1} parent=1 // pred_check
      _
    $region47: #{varmax_forward.1} parent=1 // pred_check_branch
      %90 = sbr.rel (0) target = $region49
    $region48: #{varmax_forward.1} parent=1 // pred_region
      %91 = dma.done [#allocation5], 2048
    $region49: #{varmax_forward.1} parent=1 // pred_fallthru
      _
    // Predicated region
    $region50: #{varmax_forward.1} parent=1 // pred_check
      _
    $region51: #{varmax_forward.1} parent=1 // pred_check_branch
      %93 = sbr.rel (0) target = $region53
    $region52: #{varmax_forward.1} parent=1 // pred_region
      %94 = dma.done [#allocation8], 2048
    $region53: #{varmax_forward.1} parent=1 // pred_fallthru
      _
    // Predicated region
    $region54: #{varmax_forward.1} parent=1 // pred_check
      _
    $region55: #{varmax_forward.1} parent=1 // pred_check_branch
      %96 = sbr.rel (0) target = $region57
    $region56: #{varmax_forward.1} parent=1 // pred_region
      %97 = dma.done [#allocation8], 2048
    $region57: #{varmax_forward.1} parent=1 // pred_fallthru
      _
    %v98 = vld [vmem:[#allocation2] sm:$0xff]
    %v99 = vld [vmem:[#allocation4] sm:$0xff]
    %v100 = vld [vmem:[#allocation4 + $0x8] sm:$0xff]
    %v101 = vld [vmem:[#allocation4 + $0x10] sm:$0xff]
    %v102 = vld [vmem:[#allocation4 + $0x18] sm:$0xff]
    %v103 = vld [vmem:[%s2] sm:$0x1]
    %v105 = vlaneseq
    %v106 = vshrl.u32 %v105, 7
    %v107 = vsub.s32 0, %v106
    %v108 = vrot.slane %v103, %v107
    %vm110 = vcmask 261120
    %v112 = vsel %vm110, %v98, 0
    %114 = vmatprep.subr.mxu0 0.0
    %115 = vmatpush1.msra.mxu0 0.0
    %116 = vmatprep.subr.mxu0 0.0
    %117 = vmatpush1.msra.mxu0 0.0
    %118 = vmatprep.subr.mxu0 0.0
    %119 = vmatpush1.msra.mxu0 0.0
    %120 = vmatprep.subr.mxu0 0.0
    %121 = vmatpush1.msra.mxu0 0.0
    %122 = vmatprep.subr.mxu0 0.0
    %123 = vmatpush1.msra.mxu0 0.0
    %124 = vmatprep.subr.mxu0 0.0
    %125 = vmatpush1.msra.mxu0 0.0
    %126 = vmatprep.subr.mxu0 0.0
    %127 = vmatpush1.msra.mxu0 0.0
    %128 = vmatprep.subr.mxu0 0.0
    %129 = vmatpush1.msra.mxu0 0.0
    %130 = vmatprep.subr.mxu0 0.0
    %131 = vmatpush1.msra.mxu0 0.0
    %132 = vmatprep.subr.mxu0 0.0
    %133 = vmatpush1.msra.mxu0 0.0
    %134 = vmatprep.subr.mxu0 0.0
    %135 = vmatpush1.msra.mxu0 0.0
    %136 = vmatprep.subr.mxu0 0.0
    %137 = vmatpush1.msra.mxu0 0.0
    %138 = vmatprep.subr.mxu0 0.0
    %139 = vmatpush1.msra.mxu0 %v102
    %140 = vmatprep.subr.mxu0 0.0
    %141 = vmatpush1.msra.mxu0 %v101
    %142 = vmatprep.subr.mxu0 0.0
    %143 = vmatpush1.msra.mxu0 %v100
    %144 = vmatprep.subr.mxu0 0.0
    %145 = vmatpush1.msra.mxu0 %v99
    %146 = vmatprep.subr.mxu0 0.0
    %147 = vmatpush2.msra.mxu0 0.0
    %148 = vmatprep.subr.mxu0 0.0
    %149 = vmatpush2.msra.mxu0 0.0
    %150 = vmatprep.subr.mxu0 0.0
    %151 = vmatpush2.msra.mxu0 0.0
    %152 = vmatprep.subr.mxu0 0.0
    %153 = vmatpush2.msra.mxu0 0.0
    %154 = vmatprep.subr.mxu0 0.0
    %155 = vmatpush2.msra.mxu0 0.0
    %156 = vmatprep.subr.mxu0 0.0
    %157 = vmatpush2.msra.mxu0 0.0
    %158 = vmatprep.subr.mxu0 0.0
    %159 = vmatpush2.msra.mxu0 0.0
    %160 = vmatprep.subr.mxu0 0.0
    %161 = vmatpush2.msra.mxu0 0.0
    %162 = vmatprep.subr.mxu0 0.0
    %163 = vmatpush2.msra.mxu0 0.0
    %164 = vmatprep.subr.mxu0 0.0
    %165 = vmatpush2.msra.mxu0 0.0
    %166 = vmatprep.subr.mxu0 0.0
    %167 = vmatpush2.msra.mxu0 0.0
    %168 = vmatprep.subr.mxu0 0.0
    %169 = vmatpush2.msra.mxu0 0.0
    %170 = vmatprep.subr.mxu0 0.0
    %171 = vmatpush2.msra.mxu0 0.0
    %172 = vmatprep.subr.mxu0 0.0
    %173 = vmatpush2.msra.mxu0 0.0
    %174 = vmatprep.subr.mxu0 0.0
    %175 = vmatpush2.msra.mxu0 0.0
    %176 = vmatprep.subr.mxu0 0.0
    %177 = vmatpush2.msra.mxu0 0.0
    %178 = vmatprep.mubr.f32.mxu0 0.0
    %179 = vmatmul.mubr.f32.gmra.mxu0 %v112
    %v180 = vpop.f32.mrf.mxu0
    %v181 = vadd.f32 %v108, %v180
    %v182 = vpop.f32.mrf.mxu0
    %183 = vdwg.mxu0
    %v184 = vmax.f32 %v181, 0.0
    %v185 = vld [vmem:[#allocation6] sm:$0xff]
    %v186 = vld [vmem:[#allocation6 + $0x8] sm:$0xff]
    %v187 = vld [vmem:[#allocation6 + $0x10] sm:$0xff]
    %v188 = vld [vmem:[#allocation6 + $0x18] sm:$0xff]
    %v189 = vld [vmem:[#allocation6 + $0x20] sm:$0xff]
    %v190 = vld [vmem:[#allocation6 + $0x28] sm:$0xff]
    %v191 = vld [vmem:[#allocation6 + $0x30] sm:$0xff]
    %v192 = vld [vmem:[#allocation6 + $0x38] sm:$0xff]
    %v193 = vld [vmem:[#allocation6 + $0x40] sm:$0xff]
    %v194 = vld [vmem:[#allocation6 + $0x48] sm:$0xff]
    %v195 = vld [vmem:[#allocation6 + $0x50] sm:$0xff]
    %v196 = vld [vmem:[#allocation6 + $0x58] sm:$0xff]
    %v197 = vld [vmem:[#allocation6 + $0x60] sm:$0xff]
    %v198 = vld [vmem:[#allocation6 + $0x68] sm:$0xff]
    %v199 = vld [vmem:[#allocation6 + $0x70] sm:$0xff]
    %v200 = vld [vmem:[#allocation6 + $0x78] sm:$0xff]
    %v201 = vld [vmem:[%s4] sm:$0x1]
    %v203 = vlaneseq
    %v204 = vshrl.u32 %v203, 7
    %v205 = vsub.s32 0, %v204
    %v206 = vrot.slane %v201, %v205
    %208 = vmatprep.subr.mxu0 0.0
    %209 = vmatpush1.msra.mxu0 %v200
    %210 = vmatprep.subr.mxu0 0.0
    %211 = vmatpush1.msra.mxu0 %v199
    %212 = vmatprep.subr.mxu0 0.0
    %213 = vmatpush1.msra.mxu0 %v198
    %214 = vmatprep.subr.mxu0 0.0
    %215 = vmatpush1.msra.mxu0 %v197
    %216 = vmatprep.subr.mxu0 0.0
    %217 = vmatpush1.msra.mxu0 %v196
    %218 = vmatprep.subr.mxu0 0.0
    %219 = vmatpush1.msra.mxu0 %v195
    %220 = vmatprep.subr.mxu0 0.0
    %221 = vmatpush1.msra.mxu0 %v194
    %222 = vmatprep.subr.mxu0 0.0
    %223 = vmatpush1.msra.mxu0 %v193
    %224 = vmatprep.subr.mxu0 0.0
    %225 = vmatpush1.msra.mxu0 %v192
    %226 = vmatprep.subr.mxu0 0.0
    %227 = vmatpush1.msra.mxu0 %v191
    %228 = vmatprep.subr.mxu0 0.0
    %229 = vmatpush1.msra.mxu0 %v190
    %230 = vmatprep.subr.mxu0 0.0
    %231 = vmatpush1.msra.mxu0 %v189
    %232 = vmatprep.subr.mxu0 0.0
    %233 = vmatpush1.msra.mxu0 %v188
    %234 = vmatprep.subr.mxu0 0.0
    %235 = vmatpush1.msra.mxu0 %v187
    %236 = vmatprep.subr.mxu0 0.0
    %237 = vmatpush1.msra.mxu0 %v186
    %238 = vmatprep.subr.mxu0 0.0
    %239 = vmatpush1.msra.mxu0 %v185
    %240 = vmatprep.subr.mxu0 0.0
    %241 = vmatpush2.msra.mxu0 0.0
    %242 = vmatprep.subr.mxu0 0.0
    %243 = vmatpush2.msra.mxu0 0.0
    %244 = vmatprep.subr.mxu0 0.0
    %245 = vmatpush2.msra.mxu0 0.0
    %246 = vmatprep.subr.mxu0 0.0
    %247 = vmatpush2.msra.mxu0 0.0
    %248 = vmatprep.subr.mxu0 0.0
    %249 = vmatpush2.msra.mxu0 0.0
    %250 = vmatprep.subr.mxu0 0.0
    %251 = vmatpush2.msra.mxu0 0.0
    %252 = vmatprep.subr.mxu0 0.0
    %253 = vmatpush2.msra.mxu0 0.0
    %254 = vmatprep.subr.mxu0 0.0
    %255 = vmatpush2.msra.mxu0 0.0
    %256 = vmatprep.subr.mxu0 0.0
    %257 = vmatpush2.msra.mxu0 0.0
    %258 = vmatprep.subr.mxu0 0.0
    %259 = vmatpush2.msra.mxu0 0.0
    %260 = vmatprep.subr.mxu0 0.0
    %261 = vmatpush2.msra.mxu0 0.0
    %262 = vmatprep.subr.mxu0 0.0
    %263 = vmatpush2.msra.mxu0 0.0
    %264 = vmatprep.subr.mxu0 0.0
    %265 = vmatpush2.msra.mxu0 0.0
    %266 = vmatprep.subr.mxu0 0.0
    %267 = vmatpush2.msra.mxu0 0.0
    %268 = vmatprep.subr.mxu0 0.0
    %269 = vmatpush2.msra.mxu0 0.0
    %270 = vmatprep.subr.mxu0 0.0
    %271 = vmatpush2.msra.mxu0 0.0
    %272 = vmatprep.mubr.f32.mxu0 0.0
    %273 = vmatmul.mubr.f32.gmra.mxu0 %v184
    %v274 = vpop.f32.mrf.mxu0
    %v275 = vadd.f32 %v206, %v274
    %v276 = vpop.f32.mrf.mxu0
    %277 = vdwg.mxu0
    %v278 = vmax.f32 %v275, 0.0
    %v279 = vld [vmem:[#allocation7] sm:$0xff]
    %v280 = vld [vmem:[#allocation7 + $0x8] sm:$0xff]
    %v281 = vld [vmem:[#allocation7 + $0x10] sm:$0xff]
    %v282 = vld [vmem:[#allocation7 + $0x18] sm:$0xff]
    %v283 = vld [vmem:[#allocation7 + $0x20] sm:$0xff]
    %v284 = vld [vmem:[#allocation7 + $0x28] sm:$0xff]
    %v285 = vld [vmem:[#allocation7 + $0x30] sm:$0xff]
    %v286 = vld [vmem:[#allocation7 + $0x38] sm:$0xff]
    %v287 = vld [vmem:[#allocation7 + $0x40] sm:$0xff]
    %v288 = vld [vmem:[#allocation7 + $0x48] sm:$0xff]
    %v289 = vld [vmem:[#allocation7 + $0x50] sm:$0xff]
    %v290 = vld [vmem:[#allocation7 + $0x58] sm:$0xff]
    %v291 = vld [vmem:[#allocation7 + $0x60] sm:$0xff]
    %v292 = vld [vmem:[#allocation7 + $0x68] sm:$0xff]
    %v293 = vld [vmem:[#allocation7 + $0x70] sm:$0xff]
    %v294 = vld [vmem:[#allocation7 + $0x78] sm:$0xff]
    %v295 = vld [vmem:[%s6] sm:$0x1]
    %v297 = vlaneseq
    %v298 = vshrl.u32 %v297, 7
    %v299 = vsub.s32 0, %v298
    %v300 = vrot.slane %v295, %v299
    %302 = vmatprep.subr.mxu0 0.0
    %303 = vmatpush1.msra.mxu0 %v294
    %304 = vmatprep.subr.mxu0 0.0
    %305 = vmatpush1.msra.mxu0 %v293
    %306 = vmatprep.subr.mxu0 0.0
    %307 = vmatpush1.msra.mxu0 %v292
    %308 = vmatprep.subr.mxu0 0.0
    %309 = vmatpush1.msra.mxu0 %v291
    %310 = vmatprep.subr.mxu0 0.0
    %311 = vmatpush1.msra.mxu0 %v290
    %312 = vmatprep.subr.mxu0 0.0
    %313 = vmatpush1.msra.mxu0 %v289
    %314 = vmatprep.subr.mxu0 0.0
    %315 = vmatpush1.msra.mxu0 %v288
    %316 = vmatprep.subr.mxu0 0.0
    %317 = vmatpush1.msra.mxu0 %v287
    %318 = vmatprep.subr.mxu0 0.0
    %319 = vmatpush1.msra.mxu0 %v286
    %320 = vmatprep.subr.mxu0 0.0
    %321 = vmatpush1.msra.mxu0 %v285
    %322 = vmatprep.subr.mxu0 0.0
    %323 = vmatpush1.msra.mxu0 %v284
    %324 = vmatprep.subr.mxu0 0.0
    %325 = vmatpush1.msra.mxu0 %v283
    %326 = vmatprep.subr.mxu0 0.0
    %327 = vmatpush1.msra.mxu0 %v282
    %328 = vmatprep.subr.mxu0 0.0
    %329 = vmatpush1.msra.mxu0 %v281
    %330 = vmatprep.subr.mxu0 0.0
    %331 = vmatpush1.msra.mxu0 %v280
    %332 = vmatprep.subr.mxu0 0.0
    %333 = vmatpush1.msra.mxu0 %v279
    %334 = vmatprep.subr.mxu0 0.0
    %335 = vmatpush2.msra.mxu0 0.0
    %336 = vmatprep.subr.mxu0 0.0
    %337 = vmatpush2.msra.mxu0 0.0
    %338 = vmatprep.subr.mxu0 0.0
    %339 = vmatpush2.msra.mxu0 0.0
    %340 = vmatprep.subr.mxu0 0.0
    %341 = vmatpush2.msra.mxu0 0.0
    %342 = vmatprep.subr.mxu0 0.0
    %343 = vmatpush2.msra.mxu0 0.0
    %344 = vmatprep.subr.mxu0 0.0
    %345 = vmatpush2.msra.mxu0 0.0
    %346 = vmatprep.subr.mxu0 0.0
    %347 = vmatpush2.msra.mxu0 0.0
    %348 = vmatprep.subr.mxu0 0.0
    %349 = vmatpush2.msra.mxu0 0.0
    %350 = vmatprep.subr.mxu0 0.0
    %351 = vmatpush2.msra.mxu0 0.0
    %352 = vmatprep.subr.mxu0 0.0
    %353 = vmatpush2.msra.mxu0 0.0
    %354 = vmatprep.subr.mxu0 0.0
    %355 = vmatpush2.msra.mxu0 0.0
    %356 = vmatprep.subr.mxu0 0.0
    %357 = vmatpush2.msra.mxu0 0.0
    %358 = vmatprep.subr.mxu0 0.0
    %359 = vmatpush2.msra.mxu0 0.0
    %360 = vmatprep.subr.mxu0 0.0
    %361 = vmatpush2.msra.mxu0 0.0
    %362 = vmatprep.subr.mxu0 0.0
    %363 = vmatpush2.msra.mxu0 0.0
    %364 = vmatprep.subr.mxu0 0.0
    %365 = vmatpush2.msra.mxu0 0.0
    %366 = vmatprep.mubr.f32.mxu0 0.0
    %367 = vmatmul.mubr.f32.gmra.mxu0 %v278
    %v368 = vpop.f32.mrf.mxu0
    %v369 = vadd.f32 %v300, %v368
    %v370 = vpop.f32.mrf.mxu0
    %371 = vdwg.mxu0
    %v372 = vmax.f32 %v369, 0.0
    %v373 = vld [vmem:[#allocation9] sm:$0xff]
    %v374 = vld [vmem:[#allocation9 + $0x8] sm:$0xff]
    %v375 = vld [vmem:[#allocation9 + $0x10] sm:$0xff]
    %v376 = vld [vmem:[#allocation9 + $0x18] sm:$0xff]
    %v377 = vld [vmem:[#allocation9 + $0x20] sm:$0xff]
    %v378 = vld [vmem:[#allocation9 + $0x28] sm:$0xff]
    %v379 = vld [vmem:[#allocation9 + $0x30] sm:$0xff]
    %v380 = vld [vmem:[#allocation9 + $0x38] sm:$0xff]
    %v381 = vld [vmem:[#allocation9 + $0x40] sm:$0xff]
    %v382 = vld [vmem:[#allocation9 + $0x48] sm:$0xff]
    %v383 = vld [vmem:[#allocation9 + $0x50] sm:$0xff]
    %v384 = vld [vmem:[#allocation9 + $0x58] sm:$0xff]
    %v385 = vld [vmem:[#allocation9 + $0x60] sm:$0xff]
    %v386 = vld [vmem:[#allocation9 + $0x68] sm:$0xff]
    %v387 = vld [vmem:[#allocation9 + $0x70] sm:$0xff]
    %v388 = vld [vmem:[#allocation9 + $0x78] sm:$0xff]
    %v389 = vld [vmem:[%s8] sm:$0x1]
    %v391 = vlaneseq
    %v392 = vshrl.u32 %v391, 7
    %v393 = vsub.s32 0, %v392
    %v394 = vrot.slane %v389, %v393
    %396 = vmatprep.subr.mxu0 0.0
    %397 = vmatpush1.msra.mxu0 %v388
    %398 = vmatprep.subr.mxu0 0.0
    %399 = vmatpush1.msra.mxu0 %v387
    %400 = vmatprep.subr.mxu0 0.0
    %401 = vmatpush1.msra.mxu0 %v386
    %402 = vmatprep.subr.mxu0 0.0
    %403 = vmatpush1.msra.mxu0 %v385
    %404 = vmatprep.subr.mxu0 0.0
    %405 = vmatpush1.msra.mxu0 %v384
    %406 = vmatprep.subr.mxu0 0.0
    %407 = vmatpush1.msra.mxu0 %v383
    %408 = vmatprep.subr.mxu0 0.0
    %409 = vmatpush1.msra.mxu0 %v382
    %410 = vmatprep.subr.mxu0 0.0
    %411 = vmatpush1.msra.mxu0 %v381
    %412 = vmatprep.subr.mxu0 0.0
    %413 = vmatpush1.msra.mxu0 %v380
    %414 = vmatprep.subr.mxu0 0.0
    %415 = vmatpush1.msra.mxu0 %v379
    %416 = vmatprep.subr.mxu0 0.0
    %417 = vmatpush1.msra.mxu0 %v378
    %418 = vmatprep.subr.mxu0 0.0
    %419 = vmatpush1.msra.mxu0 %v377
    %420 = vmatprep.subr.mxu0 0.0
    %421 = vmatpush1.msra.mxu0 %v376
    %422 = vmatprep.subr.mxu0 0.0
    %423 = vmatpush1.msra.mxu0 %v375
    %424 = vmatprep.subr.mxu0 0.0
    %425 = vmatpush1.msra.mxu0 %v374
    %426 = vmatprep.subr.mxu0 0.0
    %427 = vmatpush1.msra.mxu0 %v373
    %428 = vmatprep.subr.mxu0 0.0
    %429 = vmatpush2.msra.mxu0 0.0
    %430 = vmatprep.subr.mxu0 0.0
    %431 = vmatpush2.msra.mxu0 0.0
    %432 = vmatprep.subr.mxu0 0.0
    %433 = vmatpush2.msra.mxu0 0.0
    %434 = vmatprep.subr.mxu0 0.0
    %435 = vmatpush2.msra.mxu0 0.0
    %436 = vmatprep.subr.mxu0 0.0
    %437 = vmatpush2.msra.mxu0 0.0
    %438 = vmatprep.subr.mxu0 0.0
    %439 = vmatpush2.msra.mxu0 0.0
    %440 = vmatprep.subr.mxu0 0.0
    %441 = vmatpush2.msra.mxu0 0.0
    %442 = vmatprep.subr.mxu0 0.0
    %443 = vmatpush2.msra.mxu0 0.0
    %444 = vmatprep.subr.mxu0 0.0
    %445 = vmatpush2.msra.mxu0 0.0
    %446 = vmatprep.subr.mxu0 0.0
    %447 = vmatpush2.msra.mxu0 0.0
    %448 = vmatprep.subr.mxu0 0.0
    %449 = vmatpush2.msra.mxu0 0.0
    %450 = vmatprep.subr.mxu0 0.0
    %451 = vmatpush2.msra.mxu0 0.0
    %452 = vmatprep.subr.mxu0 0.0
    %453 = vmatpush2.msra.mxu0 0.0
    %454 = vmatprep.subr.mxu0 0.0
    %455 = vmatpush2.msra.mxu0 0.0
    %456 = vmatprep.subr.mxu0 0.0
    %457 = vmatpush2.msra.mxu0 0.0
    %458 = vmatprep.subr.mxu0 0.0
    %459 = vmatpush2.msra.mxu0 0.0
    %460 = vmatprep.mubr.f32.mxu0 0.0
    %461 = vmatmul.mubr.f32.gmra.mxu0 %v372
    %v462 = vpop.f32.mrf.mxu0
    %v463 = vadd.f32 %v394, %v462
    %v464 = vpop.f32.mrf.mxu0
    %465 = vdwg.mxu0
    %vm466 = vcmask 15360
    %467 = vst.msk [vmem:[%s9] sm:$0xff] %vm466, %v463
    // Predicated region
    $region58: #{varmax_forward.1} parent=1 // pred_check
      _
    $region59: #{varmax_forward.1} parent=1 // pred_check_branch
      %469 = sbr.rel (0) target = $region61
    $region60: #{varmax_forward.1} parent=1 // pred_region
      _
    $region61: #{varmax_forward.1} parent=1 // pred_fallthru
      _
    // Predicated region
    $region62: #{varmax_forward.1} parent=1 // pred_check
      _
    $region63: #{varmax_forward.1} parent=1 // pred_check_branch
      %471 = sbr.rel (0) target = $region65
    $region64: #{varmax_forward.1} parent=1 // pred_region
      _
    $region65: #{varmax_forward.1} parent=1 // pred_fallthru
      _
    %472 = vsyncpa [#allocation3], 1
    %473 = vsyncpa [#allocation5], 1
    %474 = vsyncpa [#allocation8], 1

</llo_original>
